<compile_context>
chip_gen: v7x
topology: tpu7x:2x2x1
jax: 0.10.0
libtpu: 0.0.40
codegen_flags: <defaults>
</compile_context>

<pallas_src>
import functools
import math

import jax
import jax.numpy as jnp
from jax.experimental import pallas as pl
from jax.experimental.pallas import tpu as pltpu


def _round_up(a, m):
    return ((a + m - 1) // m) * m


# ----------------------------------------------------------------------------
# Pallas kernel: one lane tile of  act(W_aug @ cols).
# Bias is folded into the last column of W_aug (matching cols row is all ones).
# ----------------------------------------------------------------------------
def _conv_mm_kernel(w_ref, cols_ref, o_ref, *, act):
    # w_ref:    (Cout, K1)  bf16   K1 = Cin*k*k + 1
    # cols_ref: (K1, LT)    bf16   LT = lane tile of N*Hout*Wout (multiple of 128)
    # o_ref:    (Cout, LT)  f32
    acc = jnp.dot(w_ref[...], cols_ref[...], preferred_element_type=jnp.float32)
    if act == "relu":
        acc = jnp.maximum(acc, 0.0)
    elif act == "sigmoid":
        acc = 1.0 / (1.0 + jnp.exp(-acc))
    # act == "none": identity
    o_ref[...] = acc.astype(o_ref.dtype)


def _im2col_lane_major(x, k, stride, pad):
    """torch.nn.functional.unfold equivalent, laid out lane-major:
    x (N, C, H, W) -> cols (C*k*k, N*Hout*Wout); K axis ordered (C, kh, kw)."""
    N, C, H, W = x.shape
    xp = jnp.pad(x, ((0, 0), (0, 0), (pad, pad), (pad, pad)))
    Hout = (H + 2 * pad - k) // stride + 1
    Wout = (W + 2 * pad - k) // stride + 1
    patches = []
    for kh in range(k):
        for kw in range(k):
            patches.append(
                xp[:, :, kh:kh + stride * Hout:stride, kw:kw + stride * Wout:stride])
    p = jnp.stack(patches, axis=2)          # (N, C, k*k, Hout, Wout)
    p = p.transpose(1, 2, 0, 3, 4)          # (C, k*k, N, Hout, Wout)
    return p.reshape(C * k * k, N * Hout * Wout), Hout, Wout


def _conv2d_act_pallas(x, w_aug, *, k, stride, pad, act, lane_tile=512):
    """Conv2d (NCHW) + bias + fused activation as a single batched matmul
    W_aug(Cout, K+1) @ cols(K+1, N*Hout*Wout), lane axis tiled in 128s."""
    N, C, H, W = x.shape
    Cout, K1 = w_aug.shape

    # im2col in bf16 (halves DMA bytes); append the all-ones bias row.
    cols, Hout, Wout = _im2col_lane_major(x.astype(jnp.bfloat16), k, stride, pad)
    NL = cols.shape[1]
    cols = jnp.concatenate(
        [cols, jnp.ones((1, NL), jnp.bfloat16)], axis=0)        # (K1, NL)

    # Pad the lane axis to a multiple of the tile (>= 128 -> unmasked stores).
    lt = min(lane_tile, _round_up(NL, 128))
    NLp = _round_up(NL, lt)
    if NLp != NL:
        cols = jnp.pad(cols, ((0, 0), (0, NLp - NL)))

    # VMEM budget for (resident weights) + double-buffered (cols tile, out tile),
    # with headroom; clamped to stay within v7x's smaller physical VMEM.
    tile_bytes = Cout * K1 * 2 + 2 * (K1 * lt * 2) + 2 * (Cout * lt * 4)
    vmem_limit = int(min(48 * 1024 * 1024, max(16 * 1024 * 1024, 8 * tile_bytes)))

    out = pl.pallas_call(
        functools.partial(_conv_mm_kernel, act=act),
        out_shape=jax.ShapeDtypeStruct((Cout, NLp), jnp.float32),
        grid=(NLp // lt,),
        in_specs=[
            pl.BlockSpec((Cout, K1), lambda j: (0, 0)),   # weights: resident
            pl.BlockSpec((K1, lt), lambda j: (0, j)),     # cols: lane tile
        ],
        out_specs=pl.BlockSpec((Cout, lt), lambda j: (0, j)),
        compiler_params=pltpu.CompilerParams(
            dimension_semantics=("parallel",),            # lane tiles independent (v7x 2 TCs)
            vmem_limit_bytes=vmem_limit),
    )(w_aug, cols)

    out = out[:, :NL].reshape(Cout, N, Hout, Wout)        # drop lane padding
    return out.transpose(1, 0, 2, 3)                      # (N, Cout, Hout, Wout)


# ----------------------------------------------------------------------------
# Module / Sequential mirroring the PyTorch structure (forward chaining).
# ----------------------------------------------------------------------------
class Module:
    def forward(self, *inp):
        raise NotImplementedError

    def param(self):
        return []


class ConvAct(Module):
    """Conv2d followed by a fused activation ('relu' | 'sigmoid' | 'none')."""

    def __init__(self, key, cin, cout, k=3, stride=1, pad=1, act="none"):
        kw, kb = jax.random.split(key)
        bound = 1.0 / math.sqrt(cin * k * k)
        self.w = jax.random.uniform(kw, (cout, cin, k, k), jnp.float32,
                                    minval=-bound, maxval=bound)
        self.b = jax.random.uniform(kb, (cout,), jnp.float32,
                                    minval=-bound, maxval=bound)
        self.k, self.stride, self.pad, self.act = k, stride, pad, act
        # Kernel-ready layout, hoisted out of forward(): bias folded in as the
        # last weight column, cast once to bf16 for the MXU.
        self.w_aug = jnp.concatenate(
            [self.w.reshape(cout, cin * k * k), self.b.reshape(cout, 1)],
            axis=1).astype(jnp.bfloat16)

    def forward(self, x):
        return _conv2d_act_pallas(x, self.w_aug, k=self.k, stride=self.stride,
                                  pad=self.pad, act=self.act)

    def param(self):
        return [self.w, self.b]


class Sequential(Module):
    """Chains module.forward calls — same semantics as the PyTorch Sequential."""

    def __init__(self, *model):
        self.model = list(model)

    def forward(self, inp):
        out = inp
        for module in self.model:
            out = module.forward(out)
        return out

    def param(self):
        parameters = []
        for module in self.model:
            for p in module.param():
                parameters.append(p)
        return parameters

    # TODO(synk): backward()/zero_grad() of the original Sequential (reverse
    # chaining of module.backward) are training-path only and not implemented;
    # only the forward pass is kerneled.


# ----------------------------------------------------------------------------
if __name__ == "__main__":
    key = jax.random.PRNGKey(0)
    k_in, k1, k2, k3 = jax.random.split(key, 4)

    # Small shapes consistent with a conv net forward: batch=2, C=4, 16x16.
    x = jax.random.normal(k_in, (2, 4, 16, 16), jnp.float32)

    model = Sequential(
        ConvAct(k1, 4, 8, k=3, stride=2, pad=1, act="relu"),     # 16x16 -> 8x8
        ConvAct(k2, 8, 8, k=3, stride=2, pad=1, act="relu"),     # 8x8   -> 4x4
        ConvAct(k3, 8, 4, k=3, stride=1, pad=1, act="sigmoid"),  # 4x4   -> 4x4
    )

    fwd = jax.jit(model.forward)   # one compiled program for the whole chain
    out = jax.block_until_ready(fwd(x))

    assert out.shape == (2, 4, 4, 4), out.shape
    assert bool(jnp.all(jnp.isfinite(out)))
    assert bool(jnp.all((out >= 0.0) & (out <= 1.0)))  # sigmoid range
    print("KERNEL_OK")
</pallas_src>

<mosaic_0001>
module attributes {stable_mosaic.version = 11 : i64} {
  func.func @_conv_mm_kernel(%arg0: i32, %arg1: memref<8x37xbf16, #tpu.memory_space<vmem>>, %arg2: memref<37x128xbf16, #tpu.memory_space<vmem>>, %arg3: memref<8x128xf32, #tpu.memory_space<vmem>>) attributes {dimension_semantics = [#tpu.dimension_semantics<parallel>], iteration_bounds = array<i64: 1>, scalar_prefetch = 0 : i64, scratch_operands = 0 : i64, tpu.core_type = #tpu.core_type<tc>, window_params = [{pipeline_mode = #tpu.pipeline_mode<synchronous>, transform_indices = @transform_0, window_bounds = array<i64: 8, 37>}, {transform_indices = @transform_1, window_bounds = array<i64: 37, 128>}, {transform_indices = @transform_2, window_bounds = array<i64: 8, 128>}]} {
    %c0 = arith.constant 0 : index
    %c0_0 = arith.constant 0 : index
    %0 = vector.load %arg1[%c0, %c0_0] : memref<8x37xbf16, #tpu.memory_space<vmem>>, vector<8x37xbf16>
    %c0_1 = arith.constant 0 : index
    %c0_2 = arith.constant 0 : index
    %1 = vector.load %arg2[%c0_1, %c0_2] : memref<37x128xbf16, #tpu.memory_space<vmem>>, vector<37x128xbf16>
    %cst = arith.constant dense<0.000000e+00> : vector<8x128xf32>
    %2 = tpu.matmul %0, %1, %cst {dimension_numbers = #tpu.dot_dimension_numbers<[1], [0], [0], [1], [0, 0, 1, 1], [], []>} : vector<8x37xbf16>, vector<37x128xbf16>, vector<8x128xf32> -> vector<8x128xf32>
    %cst_3 = arith.constant 0.000000e+00 : f32
    %3 = vector.broadcast %cst_3 : f32 to vector<8x128xf32>
    %4 = arith.maximumf %2, %3 : vector<8x128xf32>
    %c0_4 = arith.constant 0 : index
    %c0_5 = arith.constant 0 : index
    %5 = vector.load %arg3[%c0_4, %c0_5] : memref<8x128xf32, #tpu.memory_space<vmem>>, vector<8x128xf32>
    tpu.vector_store %arg3[%c0_4, %c0_5], %4 {strides = array<i32>} : memref<8x128xf32, #tpu.memory_space<vmem>>, vector<8x128xf32>,
    return
  }
  func.func @transform_0(%arg0: i32) -> (i32, i32) {
    %c0_i32 = arith.constant 0 : i32
    %c0_i32_0 = arith.constant 0 : i32
    %c0_i32_1 = arith.constant 0 : i32
    return %c0_i32, %c0_i32_0 : i32, i32
  }
  func.func @transform_1(%arg0: i32) -> (i32, i32) {
    %c0_i32 = arith.constant 0 : i32
    %c0_i32_0 = arith.constant 0 : i32
    return %c0_i32, %arg0 : i32, i32
  }
  func.func @transform_2(%arg0: i32) -> (i32, i32) {
    %c0_i32 = arith.constant 0 : i32
    %c0_i32_0 = arith.constant 0 : i32
    return %c0_i32, %arg0 : i32, i32
  }
}

module attributes {stable_mosaic.version = 11 : i64} {
  func.func @_conv_mm_kernel(%arg0: i32, %arg1: memref<8x73xbf16, #tpu.memory_space<vmem>>, %arg2: memref<73x128xbf16, #tpu.memory_space<vmem>>, %arg3: memref<8x128xf32, #tpu.memory_space<vmem>>) attributes {dimension_semantics = [#tpu.dimension_semantics<parallel>], iteration_bounds = array<i64: 1>, scalar_prefetch = 0 : i64, scratch_operands = 0 : i64, tpu.core_type = #tpu.core_type<tc>, window_params = [{pipeline_mode = #tpu.pipeline_mode<synchronous>, transform_indices = @transform_0, window_bounds = array<i64: 8, 73>}, {transform_indices = @transform_1, window_bounds = array<i64: 73, 128>}, {transform_indices = @transform_2, window_bounds = array<i64: 8, 128>}]} {
    %c0 = arith.constant 0 : index
    %c0_0 = arith.constant 0 : index
    %0 = vector.load %arg1[%c0, %c0_0] : memref<8x73xbf16, #tpu.memory_space<vmem>>, vector<8x73xbf16>
    %c0_1 = arith.constant 0 : index
    %c0_2 = arith.constant 0 : index
    %1 = vector.load %arg2[%c0_1, %c0_2] : memref<73x128xbf16, #tpu.memory_space<vmem>>, vector<73x128xbf16>
    %cst = arith.constant dense<0.000000e+00> : vector<8x128xf32>
    %2 = tpu.matmul %0, %1, %cst {dimension_numbers = #tpu.dot_dimension_numbers<[1], [0], [0], [1], [0, 0, 1, 1], [], []>} : vector<8x73xbf16>, vector<73x128xbf16>, vector<8x128xf32> -> vector<8x128xf32>
    %cst_3 = arith.constant 0.000000e+00 : f32
    %3 = vector.broadcast %cst_3 : f32 to vector<8x128xf32>
    %4 = arith.maximumf %2, %3 : vector<8x128xf32>
    %c0_4 = arith.constant 0 : index
    %c0_5 = arith.constant 0 : index
    %5 = vector.load %arg3[%c0_4, %c0_5] : memref<8x128xf32, #tpu.memory_space<vmem>>, vector<8x128xf32>
    tpu.vector_store %arg3[%c0_4, %c0_5], %4 {strides = array<i32>} : memref<8x128xf32, #tpu.memory_space<vmem>>, vector<8x128xf32>,
    return
  }
  func.func @transform_0(%arg0: i32) -> (i32, i32) {
    %c0_i32 = arith.constant 0 : i32
    %c0_i32_0 = arith.constant 0 : i32
    %c0_i32_1 = arith.constant 0 : i32
    return %c0_i32, %c0_i32_0 : i32, i32
  }
  func.func @transform_1(%arg0: i32) -> (i32, i32) {
    %c0_i32 = arith.constant 0 : i32
    %c0_i32_0 = arith.constant 0 : i32
    return %c0_i32, %arg0 : i32, i32
  }
  func.func @transform_2(%arg0: i32) -> (i32, i32) {
    %c0_i32 = arith.constant 0 : i32
    %c0_i32_0 = arith.constant 0 : i32
    return %c0_i32, %arg0 : i32, i32
  }
}

module attributes {stable_mosaic.version = 11 : i64} {
  func.func @_conv_mm_kernel(%arg0: i32, %arg1: memref<4x73xbf16, #tpu.memory_space<vmem>>, %arg2: memref<73x128xbf16, #tpu.memory_space<vmem>>, %arg3: memref<4x128xf32, #tpu.memory_space<vmem>>) attributes {dimension_semantics = [#tpu.dimension_semantics<parallel>], iteration_bounds = array<i64: 1>, scalar_prefetch = 0 : i64, scratch_operands = 0 : i64, tpu.core_type = #tpu.core_type<tc>, window_params = [{pipeline_mode = #tpu.pipeline_mode<synchronous>, transform_indices = @transform_0, window_bounds = array<i64: 4, 73>}, {transform_indices = @transform_1, window_bounds = array<i64: 73, 128>}, {transform_indices = @transform_2, window_bounds = array<i64: 4, 128>}]} {
    %c0 = arith.constant 0 : index
    %c0_0 = arith.constant 0 : index
    %0 = vector.load %arg1[%c0, %c0_0] : memref<4x73xbf16, #tpu.memory_space<vmem>>, vector<4x73xbf16>
    %c0_1 = arith.constant 0 : index
    %c0_2 = arith.constant 0 : index
    %1 = vector.load %arg2[%c0_1, %c0_2] : memref<73x128xbf16, #tpu.memory_space<vmem>>, vector<73x128xbf16>
    %cst = arith.constant dense<0.000000e+00> : vector<4x128xf32>
    %2 = tpu.matmul %0, %1, %cst {dimension_numbers = #tpu.dot_dimension_numbers<[1], [0], [0], [1], [0, 0, 1, 1], [], []>} : vector<4x73xbf16>, vector<73x128xbf16>, vector<4x128xf32> -> vector<4x128xf32>
    %cst_3 = arith.constant 0.000000e+00 : f32
    %3 = vector.broadcast %cst_3 : f32 to vector<4x128xf32>
    %4 = arith.subf %3, %2 : vector<4x128xf32>
    %5 = math.exp %4 : vector<4x128xf32>
    %cst_4 = arith.constant 1.000000e+00 : f32
    %6 = vector.broadcast %cst_4 : f32 to vector<4x128xf32>
    %7 = arith.addf %6, %5 : vector<4x128xf32>
    %cst_5 = arith.constant 1.000000e+00 : f32
    %8 = vector.broadcast %cst_5 : f32 to vector<4x128xf32>
    %9 = arith.divf %8, %7 : vector<4x128xf32>
    %c0_6 = arith.constant 0 : index
    %c0_7 = arith.constant 0 : index
    %10 = vector.load %arg3[%c0_6, %c0_7] : memref<4x128xf32, #tpu.memory_space<vmem>>, vector<4x128xf32>
    tpu.vector_store %arg3[%c0_6, %c0_7], %9 {strides = array<i32>} : memref<4x128xf32, #tpu.memory_space<vmem>>, vector<4x128xf32>,
    return
  }
  func.func @transform_0(%arg0: i32) -> (i32, i32) {
    %c0_i32 = arith.constant 0 : i32
    %c0_i32_0 = arith.constant 0 : i32
    %c0_i32_1 = arith.constant 0 : i32
    return %c0_i32, %c0_i32_0 : i32, i32
  }
  func.func @transform_1(%arg0: i32) -> (i32, i32) {
    %c0_i32 = arith.constant 0 : i32
    %c0_i32_0 = arith.constant 0 : i32
    return %c0_i32, %arg0 : i32, i32
  }
  func.func @transform_2(%arg0: i32) -> (i32, i32) {
    %c0_i32 = arith.constant 0 : i32
    %c0_i32_0 = arith.constant 0 : i32
    return %c0_i32, %arg0 : i32, i32
  }
}

</mosaic_0001>

<llo_original>
// kernel: forward.3
$region0: #{forward.3}
  #allocation0 [shape = 'u32[]', space=smem, size = 0x4, offset = 0x4, fixed_abs, tag = 'smem constant byte address 0x4 - core index']
  #allocation1 [shape = 'u32[144,128]{1,0:T(1,128)}', space=vmem, size = 0x12000, scoped, tag = 'internal scratch']
  %s0 = inlined_call_operand.vmem [shape: bf16[8,37], index: 0, kind: input, shape index: {}]
  %s1 = inlined_call_operand.vmem [shape: bf16[37,128], index: 1, kind: input, shape index: {}]
  %s2 = inlined_call_operand.vmem [shape: f32[8,128], index: 2, kind: output, shape index: {}]
  %s3 = sld [smem:[#allocation0]]
  $region18: #{forward.3} parent=0
    _
  %s5 = ssub.s32 1, %s3
  %s6 = scalar_select 0, %s5, %s3
  // Predicated region
  $region2: #{forward.3} parent=0 // pred_check
    _
  $region3: #{forward.3} parent=0 // pred_check_branch
    %8 = sbr.rel (0) target = $region5
  $region4: #{forward.3} parent=0 // pred_region
    _
  $region5: #{forward.3} parent=0 // pred_fallthru
    _
  // Predicated region
  $region6: #{forward.3} parent=0 // pred_check
    _
  $region7: #{forward.3} parent=0 // pred_check_branch
    %10 = sbr.rel (0) target = $region9
  $region8: #{forward.3} parent=0 // pred_region
    _
  $region9: #{forward.3} parent=0 // pred_fallthru
    _
  %v12 = vld [vmem:[%s0] sm:$0xf]
  %v13 = vld [vmem:[%s1] sm:$0xf]
  %v14 = vld [vmem:[%s1 + $0x4] sm:$0xf]
  %v15 = vld [vmem:[%s1 + $0x8] sm:$0xf]
  %v16 = vld [vmem:[%s1 + $0xc] sm:$0xf]
  %v17 = vld [vmem:[%s1 + $0x10] sm:$0x7]
  %v23 = vunpack.c.l.b16 %v13
  %v24 = vunpack.c.l.b16 %v14
  %v25 = vunpack.c.l.b16 %v15
  %v26 = vunpack.c.l.b16 %v16
  %v27 = vunpack.c.l.b16 %v17
  %v28 = vpack.c.b16 %v24, %v23
  %v29 = vpack.c.b16 %v26, %v25
  %v30 = vpack.c.b16 %v27, %v27
  %vm33 = vcmask 302080
  %v35 = vsel %vm33, %v12, 0
  %vm37 = vcmask 1041408
  %vm38 = vcmask 1042432
  %v39 = vsel %vm37, 4294967295, 65535
  %v40 = vsel %vm38, %v39, 0
  %v42 = vand.u32 %v30, %v40
  %44 = vmatprep.subr.bf16.mxu0 0
  %45 = vmatpush1.bf16.msra.mxu0 %v28
  %46 = vmatprep.subr.bf16.mxu0 0
  %47 = vmatpush1.bf16.msra.mxu0 %v29
  %48 = vmatprep.subr.bf16.mxu0 0
  %49 = vmatpush1.bf16.msra.mxu0 %v42
  %50 = vmatprep.subr.bf16.mxu0 0
  %51 = vmatpush1.bf16.msra.mxu0 0
  %52 = vmatprep.subr.bf16.mxu0 0
  %53 = vmatpush1.bf16.msra.mxu0 0
  %54 = vmatprep.subr.bf16.mxu0 0
  %55 = vmatpush1.bf16.msra.mxu0 0
  %56 = vmatprep.subr.bf16.mxu0 0
  %57 = vmatpush1.bf16.msra.mxu0 0
  %58 = vmatprep.subr.bf16.mxu0 0
  %59 = vmatpush1.bf16.msra.mxu0 0
  %60 = vmatprep.subr.bf16.mxu0 0
  %61 = vmatpush1.bf16.msra.mxu0 0
  %62 = vmatprep.subr.bf16.mxu0 0
  %63 = vmatpush1.bf16.msra.mxu0 0
  %64 = vmatprep.subr.bf16.mxu0 0
  %65 = vmatpush1.bf16.msra.mxu0 0
  %66 = vmatprep.subr.bf16.mxu0 0
  %67 = vmatpush1.bf16.msra.mxu0 0
  %68 = vmatprep.subr.bf16.mxu0 0
  %69 = vmatpush1.bf16.msra.mxu0 0
  %70 = vmatprep.subr.bf16.mxu0 0
  %71 = vmatpush1.bf16.msra.mxu0 0
  %72 = vmatprep.subr.bf16.mxu0 0
  %73 = vmatpush1.bf16.msra.mxu0 0
  %74 = vmatprep.subr.bf16.mxu0 0
  %75 = vmatpush1.bf16.msra.mxu0 0
  %76 = vmatprep.mubr.bf16.mxu0 0
  %77 = vmatmul.mubr.bf16.gmra.mrb[0].mxu0 %v35
  %v78 = vpop.f32.mrb[0].mxu0
  %v79 = vadd.f32 0.0, %v78
  %v80 = vpop.f32.mrb[0].mxu0
  %v81 = vpop.f32.mrb[0].mxu0
  %v82 = vpop.f32.mrb[0].mxu0
  %83 = vdwg.mxu0
  %v84 = vmax.f32 %v79, 0.0
  %85 = vst [vmem:[%s2] sm:$0xff] %v84
  // Predicated region
  $region10: #{forward.3} parent=0 // pred_check
    _
  $region11: #{forward.3} parent=0 // pred_check_branch
    %87 = sbr.rel (0) target = $region13
  $region12: #{forward.3} parent=0 // pred_region
    _
  $region13: #{forward.3} parent=0 // pred_fallthru
    _
  // Predicated region
  $region14: #{forward.3} parent=0 // pred_check
    _
  $region15: #{forward.3} parent=0 // pred_check_branch
    %89 = sbr.rel (0) target = $region17
  $region16: #{forward.3} parent=0 // pred_region
    _
  $region17: #{forward.3} parent=0 // pred_fallthru
    _

// kernel: forward.4
$region0: #{forward.4}
  #allocation0 [shape = 'u32[]', space=smem, size = 0x4, offset = 0x4, fixed_abs, tag = 'smem constant byte address 0x4 - core index']
  #allocation1 [shape = 'u32[144,128]{1,0:T(1,128)}', space=vmem, size = 0x12000, scoped, tag = 'internal scratch']
  %s0 = inlined_call_operand.vmem [shape: bf16[8,73], index: 0, kind: input, shape index: {}]
  %s1 = inlined_call_operand.vmem [shape: bf16[73,128], index: 1, kind: input, shape index: {}]
  %s2 = inlined_call_operand.vmem [shape: f32[8,128], index: 2, kind: output, shape index: {}]
  %s3 = sld [smem:[#allocation0]]
  $region18: #{forward.4} parent=0
    _
  %s5 = ssub.s32 1, %s3
  %s6 = scalar_select 0, %s5, %s3
  // Predicated region
  $region2: #{forward.4} parent=0 // pred_check
    _
  $region3: #{forward.4} parent=0 // pred_check_branch
    %8 = sbr.rel (0) target = $region5
  $region4: #{forward.4} parent=0 // pred_region
    _
  $region5: #{forward.4} parent=0 // pred_fallthru
    _
  // Predicated region
  $region6: #{forward.4} parent=0 // pred_check
    _
  $region7: #{forward.4} parent=0 // pred_check_branch
    %10 = sbr.rel (0) target = $region9
  $region8: #{forward.4} parent=0 // pred_region
    _
  $region9: #{forward.4} parent=0 // pred_fallthru
    _
  %v12 = vld [vmem:[%s0] sm:$0xf]
  %v13 = vld [vmem:[%s1] sm:$0xf]
  %v14 = vld [vmem:[%s1 + $0x4] sm:$0xf]
  %v15 = vld [vmem:[%s1 + $0x8] sm:$0xf]
  %v16 = vld [vmem:[%s1 + $0xc] sm:$0xf]
  %v17 = vld [vmem:[%s1 + $0x10] sm:$0xf]
  %v18 = vld [vmem:[%s1 + $0x14] sm:$0xf]
  %v19 = vld [vmem:[%s1 + $0x18] sm:$0xf]
  %v20 = vld [vmem:[%s1 + $0x1c] sm:$0xf]
  %v21 = vld [vmem:[%s1 + $0x20] sm:$0xf]
  %v22 = vld [vmem:[%s1 + $0x24] sm:$0x1]
  %v33 = vunpack.c.l.b16 %v13
  %v34 = vunpack.c.l.b16 %v14
  %v35 = vunpack.c.l.b16 %v15
  %v36 = vunpack.c.l.b16 %v16
  %v37 = vunpack.c.l.b16 %v17
  %v38 = vunpack.c.l.b16 %v18
  %v39 = vunpack.c.l.b16 %v19
  %v40 = vunpack.c.l.b16 %v20
  %v41 = vunpack.c.l.b16 %v21
  %v42 = vunpack.c.l.b16 %v22
  %v43 = vpack.c.b16 %v34, %v33
  %v44 = vpack.c.b16 %v36, %v35
  %v45 = vpack.c.b16 %v38, %v37
  %v46 = vpack.c.b16 %v40, %v39
  %v47 = vpack.c.b16 %v42, %v41
  %vm52 = vcmask 596992
  %v54 = vsel %vm52, %v12, 0
  %vm56 = vcmask 1043456
  %vm57 = vcmask 1044480
  %v58 = vsel %vm56, 4294967295, 65535
  %v59 = vsel %vm57, %v58, 0
  %v61 = vand.u32 %v47, %v59
  %63 = vmatprep.subr.bf16.mxu0 0
  %64 = vmatpush1.bf16.msra.mxu0 %v43
  %65 = vmatprep.subr.bf16.mxu0 0
  %66 = vmatpush1.bf16.msra.mxu0 %v44
  %67 = vmatprep.subr.bf16.mxu0 0
  %68 = vmatpush1.bf16.msra.mxu0 %v45
  %69 = vmatprep.subr.bf16.mxu0 0
  %70 = vmatpush1.bf16.msra.mxu0 %v46
  %71 = vmatprep.subr.bf16.mxu0 0
  %72 = vmatpush1.bf16.msra.mxu0 %v61
  %73 = vmatprep.subr.bf16.mxu0 0
  %74 = vmatpush1.bf16.msra.mxu0 0
  %75 = vmatprep.subr.bf16.mxu0 0
  %76 = vmatpush1.bf16.msra.mxu0 0
  %77 = vmatprep.subr.bf16.mxu0 0
  %78 = vmatpush1.bf16.msra.mxu0 0
  %79 = vmatprep.subr.bf16.mxu0 0
  %80 = vmatpush1.bf16.msra.mxu0 0
  %81 = vmatprep.subr.bf16.mxu0 0
  %82 = vmatpush1.bf16.msra.mxu0 0
  %83 = vmatprep.subr.bf16.mxu0 0
  %84 = vmatpush1.bf16.msra.mxu0 0
  %85 = vmatprep.subr.bf16.mxu0 0
  %86 = vmatpush1.bf16.msra.mxu0 0
  %87 = vmatprep.subr.bf16.mxu0 0
  %88 = vmatpush1.bf16.msra.mxu0 0
  %89 = vmatprep.subr.bf16.mxu0 0
  %90 = vmatpush1.bf16.msra.mxu0 0
  %91 = vmatprep.subr.bf16.mxu0 0
  %92 = vmatpush1.bf16.msra.mxu0 0
  %93 = vmatprep.subr.bf16.mxu0 0
  %94 = vmatpush1.bf16.msra.mxu0 0
  %95 = vmatprep.mubr.bf16.mxu0 0
  %96 = vmatmul.mubr.bf16.gmra.mrb[0].mxu0 %v54
  %v97 = vpop.f32.mrb[0].mxu0
  %v98 = vadd.f32 0.0, %v97
  %v99 = vpop.f32.mrb[0].mxu0
  %v100 = vpop.f32.mrb[0].mxu0
  %v101 = vpop.f32.mrb[0].mxu0
  %102 = vdwg.mxu0
  %v103 = vmax.f32 %v98, 0.0
  %104 = vst [vmem:[%s2] sm:$0xff] %v103
  // Predicated region
  $region10: #{forward.4} parent=0 // pred_check
    _
  $region11: #{forward.4} parent=0 // pred_check_branch
    %106 = sbr.rel (0) target = $region13
  $region12: #{forward.4} parent=0 // pred_region
    _
  $region13: #{forward.4} parent=0 // pred_fallthru
    _
  // Predicated region
  $region14: #{forward.4} parent=0 // pred_check
    _
  $region15: #{forward.4} parent=0 // pred_check_branch
    %108 = sbr.rel (0) target = $region17
  $region16: #{forward.4} parent=0 // pred_region
    _
  $region17: #{forward.4} parent=0 // pred_fallthru
    _

// kernel: forward.5
$region0: #{forward.5}
  #allocation0 [shape = 'u32[]', space=smem, size = 0x4, offset = 0x4, fixed_abs, tag = 'smem constant byte address 0x4 - core index']
  #allocation1 [shape = 'u32[144,128]{1,0:T(1,128)}', space=vmem, size = 0x12000, scoped, tag = 'internal scratch']
  %s0 = inlined_call_operand.vmem [shape: bf16[4,73], index: 0, kind: input, shape index: {}]
  %s1 = inlined_call_operand.vmem [shape: bf16[73,128], index: 1, kind: input, shape index: {}]
  %s2 = inlined_call_operand.vmem [shape: f32[4,128], index: 2, kind: output, shape index: {}]
  %s3 = sld [smem:[#allocation0]]
  $region18: #{forward.5} parent=0
    _
  %s5 = ssub.s32 1, %s3
  %s6 = scalar_select 0, %s5, %s3
  // Predicated region
  $region2: #{forward.5} parent=0 // pred_check
    _
  $region3: #{forward.5} parent=0 // pred_check_branch
    %8 = sbr.rel (0) target = $region5
  $region4: #{forward.5} parent=0 // pred_region
    _
  $region5: #{forward.5} parent=0 // pred_fallthru
    _
  // Predicated region
  $region6: #{forward.5} parent=0 // pred_check
    _
  $region7: #{forward.5} parent=0 // pred_check_branch
    %10 = sbr.rel (0) target = $region9
  $region8: #{forward.5} parent=0 // pred_region
    _
  $region9: #{forward.5} parent=0 // pred_fallthru
    _
  %v12 = vld [vmem:[%s0] sm:$0x3]
  %v13 = vld [vmem:[%s1] sm:$0xf]
  %v14 = vld [vmem:[%s1 + $0x4] sm:$0xf]
  %v15 = vld [vmem:[%s1 + $0x8] sm:$0xf]
  %v16 = vld [vmem:[%s1 + $0xc] sm:$0xf]
  %v17 = vld [vmem:[%s1 + $0x10] sm:$0xf]
  %v18 = vld [vmem:[%s1 + $0x14] sm:$0xf]
  %v19 = vld [vmem:[%s1 + $0x18] sm:$0xf]
  %v20 = vld [vmem:[%s1 + $0x1c] sm:$0xf]
  %v21 = vld [vmem:[%s1 + $0x20] sm:$0xf]
  %v22 = vld [vmem:[%s1 + $0x24] sm:$0x1]
  %v33 = vunpack.c.l.b16 %v13
  %v34 = vunpack.c.l.b16 %v14
  %v35 = vunpack.c.l.b16 %v15
  %v36 = vunpack.c.l.b16 %v16
  %v37 = vunpack.c.l.b16 %v17
  %v38 = vunpack.c.l.b16 %v18
  %v39 = vunpack.c.l.b16 %v19
  %v40 = vunpack.c.l.b16 %v20
  %v41 = vunpack.c.l.b16 %v21
  %v42 = vunpack.c.l.b16 %v22
  %v43 = vpack.c.b16 %v34, %v33
  %v44 = vpack.c.b16 %v36, %v35
  %v45 = vpack.c.b16 %v38, %v37
  %v46 = vpack.c.b16 %v40, %v39
  %v47 = vpack.c.b16 %v42, %v41
  %vm52 = vcmask 596992
  %v54 = vsel %vm52, %v12, 0
  %vm56 = vcmask 1043456
  %vm57 = vcmask 1044480
  %v58 = vsel %vm56, 4294967295, 65535
  %v59 = vsel %vm57, %v58, 0
  %v61 = vand.u32 %v47, %v59
  %63 = vmatprep.subr.bf16.mxu0 0
  %64 = vmatpush1.bf16.msra.mxu0 %v43
  %65 = vmatprep.subr.bf16.mxu0 0
  %66 = vmatpush1.bf16.msra.mxu0 %v44
  %67 = vmatprep.subr.bf16.mxu0 0
  %68 = vmatpush1.bf16.msra.mxu0 %v45
  %69 = vmatprep.subr.bf16.mxu0 0
  %70 = vmatpush1.bf16.msra.mxu0 %v46
  %71 = vmatprep.subr.bf16.mxu0 0
  %72 = vmatpush1.bf16.msra.mxu0 %v61
  %73 = vmatprep.subr.bf16.mxu0 0
  %74 = vmatpush1.bf16.msra.mxu0 0
  %75 = vmatprep.subr.bf16.mxu0 0
  %76 = vmatpush1.bf16.msra.mxu0 0
  %77 = vmatprep.subr.bf16.mxu0 0
  %78 = vmatpush1.bf16.msra.mxu0 0
  %79 = vmatprep.subr.bf16.mxu0 0
  %80 = vmatpush1.bf16.msra.mxu0 0
  %81 = vmatprep.subr.bf16.mxu0 0
  %82 = vmatpush1.bf16.msra.mxu0 0
  %83 = vmatprep.subr.bf16.mxu0 0
  %84 = vmatpush1.bf16.msra.mxu0 0
  %85 = vmatprep.subr.bf16.mxu0 0
  %86 = vmatpush1.bf16.msra.mxu0 0
  %87 = vmatprep.subr.bf16.mxu0 0
  %88 = vmatpush1.bf16.msra.mxu0 0
  %89 = vmatprep.subr.bf16.mxu0 0
  %90 = vmatpush1.bf16.msra.mxu0 0
  %91 = vmatprep.subr.bf16.mxu0 0
  %92 = vmatpush1.bf16.msra.mxu0 0
  %93 = vmatprep.subr.bf16.mxu0 0
  %94 = vmatpush1.bf16.msra.mxu0 0
  %95 = vmatprep.mubr.bf16.mxu0 0
  %96 = vmatmul.mubr.bf16.gmra.mrb[0].mxu0 %v54
  %v97 = vpop.f32.mrb[0].mxu0
  %v98 = vadd.f32 0.0, %v97
  %v99 = vpop.f32.mrb[0].mxu0
  %v100 = vpop.f32.mrb[0].mxu0
  %v101 = vpop.f32.mrb[0].mxu0
  %102 = vdwg.mxu0
  %v103 = vsub.f32 0.0, %v98
  %v104 = vmul.f32 %v103, 1.442695
  %v105 = vpow.pop %v104
  %v106 = vadd.f32 %v105, 1.0
  %v107 = vrcp.pop %v106
  %v108 = vmul.f32 1.0, %v107
  %109 = vst [vmem:[%s2] sm:$0xf] %v108
  // Predicated region
  $region10: #{forward.5} parent=0 // pred_check
    _
  $region11: #{forward.5} parent=0 // pred_check_branch
    %111 = sbr.rel (0) target = $region13
  $region12: #{forward.5} parent=0 // pred_region
    _
  $region13: #{forward.5} parent=0 // pred_fallthru
    _
  // Predicated region
  $region14: #{forward.5} parent=0 // pred_check
    _
  $region15: #{forward.5} parent=0 // pred_check_branch
    %113 = sbr.rel (0) target = $region17
  $region16: #{forward.5} parent=0 // pred_region
    _
  $region17: #{forward.5} parent=0 // pred_fallthru
    _

</llo_original>
